<compile_context>
chip_gen: v5e
topology: v5e:2x2
jax: 0.10.0
libtpu: 0.0.40
codegen_flags: <defaults>
</compile_context>

<pallas_src>
import functools
import inspect

import jax
import jax.numpy as jnp
import numpy as np
from jax.experimental import pallas as pl
from jax.experimental.pallas import tpu as pltpu

_LANE = 128
# Per-block byte cap; 2 x (input block + output block) double-buffered stays
# well under the default scoped VMEM on v5e/v6e/v7x, so no vmem_limit_bytes.
_BLOCK_BYTES_CAP = 2 * 1024 * 1024


def _round_up(x, m):
    return (x + m - 1) // m * m


def _pick_hw_tile(hw, c, itemsize, cap_bytes=_BLOCK_BYTES_CAP):
    """Largest multiple of 128 lanes such that one (1, C, tile) block <= cap."""
    hw128 = _round_up(hw, _LANE)
    max_lanes = max(_LANE, (cap_bytes // max(1, c * itemsize)) // _LANE * _LANE)
    return min(hw128, max_lanes)


def _apply_prologue(x, prologue):
    if prologue is None:
        return x
    kind = prologue[0]
    if kind == "relu":
        return jnp.maximum(x, 0.0)
    if kind == "leakyrelu":
        return jnp.where(x >= 0, x, prologue[1] * x)
    raise NotImplementedError(kind)


# -----------------------------------------------------------------------------
# Pallas kernel: a chain of GDN1 stages (plus optional elementwise prologue)
# applied to one (C, HW_TILE) tile of one batch element.
# -----------------------------------------------------------------------------
def _gdn_chain_kernel(*refs, n_stages, inverses, prologue):
    x_ref = refs[0]
    o_ref = refs[-1]

    x = x_ref[0].astype(jnp.float32)              # (C, HW_TILE), lane-dense
    x = _apply_prologue(x, prologue)

    for s in range(n_stages):
        gamma_ref = refs[1 + 2 * s]               # (C, C)  effective gamma
        beta_ref = refs[2 + 2 * s]                # (C, 1)  effective beta
        # 1x1 conv over channels == one MXU matmul; beta fused as broadcast.
        norm = jnp.dot(gamma_ref[...], jnp.abs(x),
                       preferred_element_type=jnp.float32) + beta_ref[...]
        if inverses[s]:
            x = x * norm
        else:
            x = x * pl.reciprocal(norm, approx=False)

    o_ref[0] = x.astype(o_ref.dtype)


def _run_gdn_chain(x, stages, *, prologue=None):
    """Run (optional elementwise prologue +) a fused chain of GDN1 stages.

    stages: list of (gamma_eff (C, C), beta_eff (C,), inverse: bool).
    x: NCHW (4-D) or NCDWH (5-D); spatial dims are folded, layout untouched.
    """
    orig_shape = x.shape
    orig_dtype = x.dtype
    N, C = int(x.shape[0]), int(x.shape[1])
    hw = int(np.prod(x.shape[2:]))                # 5-D input folds for free

    x_flat = x.reshape(N, C, hw)                  # pure reshape, native dtype
    itemsize = int(x_flat.dtype.itemsize)
    hw_tile = _pick_hw_tile(hw, C, itemsize)
    hw_pad = _round_up(hw, hw_tile)
    if hw_pad != hw:
        # Zero padding is safe: norm = beta > 0 on padded lanes; padded output
        # columns are sliced off below.  Keeps every store unmasked/lane-dense.
        x_flat = jnp.pad(x_flat, ((0, 0), (0, 0), (0, hw_pad - hw)))

    params = []
    inverses = []
    for gamma_eff, beta_eff, inverse in stages:
        params.append(gamma_eff.astype(jnp.float32).reshape(C, C))
        params.append(beta_eff.astype(jnp.float32).reshape(C, 1))
        inverses.append(bool(inverse))
    n_stages = len(stages)

    kernel = functools.partial(_gdn_chain_kernel, n_stages=n_stages,
                               inverses=tuple(inverses), prologue=prologue)

    grid = (N, hw_pad // hw_tile)
    data_spec = pl.BlockSpec((1, C, hw_tile), lambda b, t: (b, 0, t))
    param_specs = [pl.BlockSpec(p.shape, lambda b, t: (0, 0)) for p in params]

    flops = int(2 * N * C * C * hw_pad * n_stages)
    bytes_accessed = int(2 * N * C * hw_pad * itemsize
                         + sum(p.size * 4 for p in params))

    out = pl.pallas_call(
        kernel,
        out_shape=jax.ShapeDtypeStruct((N, C, hw_pad), orig_dtype),
        grid_spec=pltpu.PrefetchScalarGridSpec(
            num_scalar_prefetch=0,
            grid=grid,
            in_specs=[data_spec] + param_specs,
            out_specs=data_spec,
        ),
        compiler_params=pltpu.CompilerParams(
            dimension_semantics=("parallel", "parallel")),
        cost_estimate=pl.CostEstimate(flops=flops, transcendentals=0,
                                      bytes_accessed=bytes_accessed),
        input_output_aliases={0: 0},
    )(x_flat, *params)

    if hw_pad != hw:
        out = out[:, :, :hw]
    return out.reshape(orig_shape)


# -----------------------------------------------------------------------------
# Module-level wrappers mirroring the PyTorch classes
# -----------------------------------------------------------------------------
class _ReLU:
    @staticmethod
    def as_prologue():
        return ("relu",)

    def forward(self, inputs):
        return jnp.maximum(inputs, 0.0)

    __call__ = forward


class _LeakyReLU:
    def __init__(self, slope=0.2):
        self.slope = slope

    def as_prologue(self):
        return ("leakyrelu", float(self.slope))

    def forward(self, inputs):
        return jnp.where(inputs >= 0, inputs, self.slope * inputs)

    __call__ = forward


class PallasGDN1:
    """GDN1: y_i = x_i / (beta_i + sum_j gamma_ij |x_j|)  (or * if inverse)."""

    def __init__(self, ch, inverse=False, beta_min=1e-5, gamma_init=0.1,
                 reparam_offset=2.0 ** -18):
        self.inverse = inverse
        self.beta_min = beta_min
        self.reparam_offset = reparam_offset
        pedestal = reparam_offset ** 2
        # Same init as the PyTorch module's build().
        self.beta = jnp.sqrt(jnp.ones((ch,), jnp.float32) + pedestal)
        self.gamma = jnp.sqrt(gamma_init * jnp.eye(ch, dtype=jnp.float32)
                              + pedestal)

    def effective_params(self):
        # LowerBound (clamp-below) + square - pedestal, hoisted out of the
        # kernel: O(C^2) XLA work done once per call instead of per grid step.
        pedestal = self.reparam_offset ** 2
        beta_bound = (self.beta_min + pedestal) ** 0.5
        gamma_bound = self.reparam_offset
        beta = jnp.maximum(self.beta, beta_bound) ** 2 - pedestal
        gamma = jnp.maximum(self.gamma, gamma_bound) ** 2 - pedestal
        return gamma, beta

    def forward(self, inputs, prologue=None):
        gamma_eff, beta_eff = self.effective_params()
        return _run_gdn_chain(inputs, [(gamma_eff, beta_eff, self.inverse)],
                              prologue=prologue)

    __call__ = forward


class CustomSequential:
    """Mirrors the PyTorch CustomSequential, with wrapper-level fusion of
    adjacent elementwise + GDN modules into a single Pallas kernel call."""

    def __init__(self, *modules):
        self.modules = list(modules)

    def forward(self, input, cond):
        # TODO(synk): the cond-aware dispatch is Python-level control flow;
        # none of the modules Coder.build_activation produces take `cond`.
        mods = self.modules
        i, n = 0, len(mods)
        while i < n:
            m = mods[i]
            if 'cond' in str(inspect.signature(m.forward)):
                input = m.forward(input, cond)
                i += 1
                continue
            # Fuse an elementwise module into the following GDN as a prologue.
            prologue = None
            j = i
            if (isinstance(m, (_ReLU, _LeakyReLU)) and j + 1 < n
                    and isinstance(mods[j + 1], PallasGDN1)):
                prologue = m.as_prologue()
                j += 1
            if isinstance(mods[j], PallasGDN1):
                # Fuse consecutive GDN/IGDN layers (e.g. gdn -> igdn) into one
                # multi-stage kernel: one HBM round trip for the whole chain.
                stages = []
                while j < n and isinstance(mods[j], PallasGDN1):
                    g, b = mods[j].effective_params()
                    stages.append((g, b, mods[j].inverse))
                    j += 1
                input = _run_gdn_chain(input, stages, prologue=prologue)
                i = j
            else:
                input = m.forward(input)
                i += 1
        return input

    __call__ = forward


class Coder:
    def __init__(self):
        self.network = CustomSequential()

    def build_activation(self, act, param=None):
        if act == 'relu':
            return _ReLU()
        elif act == 'gdn':
            return PallasGDN1(param)
        elif act == 'igdn':
            return PallasGDN1(param, True)
        elif act == 'leakyrelu':
            return _LeakyReLU(0.2)
        else:
            raise NotImplementedError

    def forward(self, input, cond=None):
        return self.network.forward(input, cond)


# -----------------------------------------------------------------------------
# Pure-JAX reference mirroring the PyTorch GDN1.forward
# -----------------------------------------------------------------------------
def _gdn1_ref(x, beta_p, gamma_p, inverse, beta_min=1e-5,
              reparam_offset=2.0 ** -18):
    pedestal = reparam_offset ** 2
    beta_bound = (beta_min + pedestal) ** 0.5
    gamma_bound = reparam_offset
    beta = jnp.maximum(beta_p, beta_bound) ** 2 - pedestal
    gamma = jnp.maximum(gamma_p, gamma_bound) ** 2 - pedestal
    norm = jnp.einsum('ij,njhw->nihw', gamma, jnp.abs(x.astype(jnp.float32)))
    norm = norm + beta[None, :, None, None]
    return x * norm if inverse else x / norm


if __name__ == "__main__":
    N, ch, H, W = 2, 4, 16, 16

    key = jax.random.PRNGKey(0)
    kx, kg1, kb1, kg2, kb2 = jax.random.split(key, 5)
    x = jax.random.normal(kx, (N, ch, H, W), dtype=jnp.float32)

    coder = Coder()
    relu = coder.build_activation('relu')
    gdn = coder.build_activation('gdn', ch)
    igdn = coder.build_activation('igdn', ch)

    # Perturb the default (diagonal) parameters as if trained, so the in-kernel
    # (C, C) @ (C, HW_TILE) matmul mixes channels non-trivially.
    gdn.gamma = gdn.gamma + 0.02 * jax.random.uniform(kg1, (ch, ch), jnp.float32)
    gdn.beta = gdn.beta + 0.10 * jax.random.uniform(kb1, (ch,), jnp.float32)
    igdn.gamma = igdn.gamma + 0.02 * jax.random.uniform(kg2, (ch, ch), jnp.float32)
    igdn.beta = igdn.beta + 0.10 * jax.random.uniform(kb2, (ch,), jnp.float32)

    # relu -> gdn -> igdn: the relu fuses as a kernel prologue and the
    # gdn/igdn pair fuses into a single 2-stage kernel call.
    coder.network = CustomSequential(relu, gdn, igdn)

    out = coder.forward(x)
    jax.block_until_ready(out)

    ref = jnp.maximum(x, 0.0)
    ref = _gdn1_ref(ref, gdn.beta, gdn.gamma, inverse=False)
    ref = _gdn1_ref(ref, igdn.beta, igdn.gamma, inverse=True)
    np.testing.assert_allclose(np.asarray(out), np.asarray(ref),
                               rtol=1e-5, atol=1e-5)
    assert out.shape == x.shape and out.dtype == x.dtype

    print("KERNEL_OK")
</pallas_src>

<mosaic_0001>
module attributes {stable_mosaic.version = 11 : i64} {
  func.func @_gdn_chain_kernel(%arg0: i32, %arg1: i32, %arg2: memref<1x4x256xf32, #tpu.memory_space<vmem>>, %arg3: memref<4x4xf32, #tpu.memory_space<vmem>>, %arg4: memref<4x1xf32, #tpu.memory_space<vmem>>, %arg5: memref<4x4xf32, #tpu.memory_space<vmem>>, %arg6: memref<4x1xf32, #tpu.memory_space<vmem>>, %arg7: memref<1x4x256xf32, #tpu.memory_space<vmem>>) attributes {dimension_semantics = [#tpu.dimension_semantics<parallel>, #tpu.dimension_semantics<parallel>], iteration_bounds = array<i64: 2, 1>, scalar_prefetch = 0 : i64, scratch_operands = 0 : i64, tpu.core_type = #tpu.core_type<tc>, window_params = [{transform_indices = @transform_0, window_bounds = array<i64: 1, 4, 256>}, {pipeline_mode = #tpu.pipeline_mode<synchronous>, transform_indices = @transform_1, window_bounds = array<i64: 4, 4>}, {pipeline_mode = #tpu.pipeline_mode<synchronous>, transform_indices = @transform_2, window_bounds = array<i64: 4, 1>}, {pipeline_mode = #tpu.pipeline_mode<synchronous>, transform_indices = @transform_3, window_bounds = array<i64: 4, 4>}, {pipeline_mode = #tpu.pipeline_mode<synchronous>, transform_indices = @transform_4, window_bounds = array<i64: 4, 1>}, {transform_indices = @transform_5, window_bounds = array<i64: 1, 4, 256>}]} {
    %c0 = arith.constant 0 : index
    %c0_0 = arith.constant 0 : index
    %c0_1 = arith.constant 0 : index
    %0 = vector.load %arg2[%c0, %c0_0, %c0_1] : memref<1x4x256xf32, #tpu.memory_space<vmem>>, vector<1x4x256xf32>
    %1 = vector.shape_cast %0 : vector<1x4x256xf32> to vector<4x256xf32>
    %cst = arith.constant 0.000000e+00 : f32
    %2 = vector.broadcast %cst : f32 to vector<4x256xf32>
    %3 = arith.maximumf %1, %2 : vector<4x256xf32>
    %c0_2 = arith.constant 0 : index
    %c0_3 = arith.constant 0 : index
    %4 = vector.load %arg3[%c0_2, %c0_3] : memref<4x4xf32, #tpu.memory_space<vmem>>, vector<4x4xf32>
    %5 = math.absf %3 : vector<4x256xf32>
    %cst_4 = arith.constant dense<0.000000e+00> : vector<4x256xf32>
    %6 = tpu.matmul %4, %5, %cst_4 {dimension_numbers = #tpu.dot_dimension_numbers<[1], [0], [0], [1], [0, 0, 1, 1], [], []>} : vector<4x4xf32>, vector<4x256xf32>, vector<4x256xf32> -> vector<4x256xf32>
    %c0_5 = arith.constant 0 : index
    %c0_6 = arith.constant 0 : index
    %7 = vector.load %arg4[%c0_5, %c0_6] : memref<4x1xf32, #tpu.memory_space<vmem>>, vector<4x1xf32>
    %8 = vector.broadcast %7 : vector<4x1xf32> to vector<4x256xf32>
    %9 = arith.addf %6, %8 : vector<4x256xf32>
    %10 = tpu.reciprocal %9 : vector<4x256xf32> -> vector<4x256xf32>
    %11 = arith.mulf %3, %10 : vector<4x256xf32>
    %c0_7 = arith.constant 0 : index
    %c0_8 = arith.constant 0 : index
    %12 = vector.load %arg5[%c0_7, %c0_8] : memref<4x4xf32, #tpu.memory_space<vmem>>, vector<4x4xf32>
    %13 = math.absf %11 : vector<4x256xf32>
    %cst_9 = arith.constant dense<0.000000e+00> : vector<4x256xf32>
    %14 = tpu.matmul %12, %13, %cst_9 {dimension_numbers = #tpu.dot_dimension_numbers<[1], [0], [0], [1], [0, 0, 1, 1], [], []>} : vector<4x4xf32>, vector<4x256xf32>, vector<4x256xf32> -> vector<4x256xf32>
    %c0_10 = arith.constant 0 : index
    %c0_11 = arith.constant 0 : index
    %15 = vector.load %arg6[%c0_10, %c0_11] : memref<4x1xf32, #tpu.memory_space<vmem>>, vector<4x1xf32>
    %16 = vector.broadcast %15 : vector<4x1xf32> to vector<4x256xf32>
    %17 = arith.addf %14, %16 : vector<4x256xf32>
    %18 = arith.mulf %11, %17 : vector<4x256xf32>
    %c0_12 = arith.constant 0 : index
    %c0_13 = arith.constant 0 : index
    %c0_14 = arith.constant 0 : index
    %19 = vector.load %arg7[%c0_12, %c0_13, %c0_14] : memref<1x4x256xf32, #tpu.memory_space<vmem>>, vector<1x4x256xf32>
    %20 = vector.shape_cast %19 : vector<1x4x256xf32> to vector<4x256xf32>
    %21 = vector.shape_cast %18 : vector<4x256xf32> to vector<1x4x256xf32>
    tpu.vector_store %arg7[%c0_12, %c0_13, %c0_14], %21 {strides = array<i32>} : memref<1x4x256xf32, #tpu.memory_space<vmem>>, vector<1x4x256xf32>,
    return
  }
  func.func @transform_0(%arg0: i32, %arg1: i32) -> (i32, i32, i32) {
    %c0_i32 = arith.constant 0 : i32
    %c0_i32_0 = arith.constant 0 : i32
    return %arg0, %c0_i32, %arg1 : i32, i32, i32
  }
  func.func @transform_1(%arg0: i32, %arg1: i32) -> (i32, i32) {
    %c0_i32 = arith.constant 0 : i32
    %c0_i32_0 = arith.constant 0 : i32
    %c0_i32_1 = arith.constant 0 : i32
    return %c0_i32, %c0_i32_0 : i32, i32
  }
  func.func @transform_2(%arg0: i32, %arg1: i32) -> (i32, i32) {
    %c0_i32 = arith.constant 0 : i32
    %c0_i32_0 = arith.constant 0 : i32
    %c0_i32_1 = arith.constant 0 : i32
    return %c0_i32, %c0_i32_0 : i32, i32
  }
  func.func @transform_3(%arg0: i32, %arg1: i32) -> (i32, i32) {
    %c0_i32 = arith.constant 0 : i32
    %c0_i32_0 = arith.constant 0 : i32
    %c0_i32_1 = arith.constant 0 : i32
    return %c0_i32, %c0_i32_0 : i32, i32
  }
  func.func @transform_4(%arg0: i32, %arg1: i32) -> (i32, i32) {
    %c0_i32 = arith.constant 0 : i32
    %c0_i32_0 = arith.constant 0 : i32
    %c0_i32_1 = arith.constant 0 : i32
    return %c0_i32, %c0_i32_0 : i32, i32
  }
  func.func @transform_5(%arg0: i32, %arg1: i32) -> (i32, i32, i32) {
    %c0_i32 = arith.constant 0 : i32
    %c0_i32_0 = arith.constant 0 : i32
    return %arg0, %c0_i32, %arg1 : i32, i32, i32
  }
}

</mosaic_0001>

<llo_original>
// kernel: tpu_custom_call.1
$region0: #{tpu_custom_call.1}
  #allocation0 [shape = 'u32[]', space=smem, size = 0x4, offset = 0x4, fixed_abs, tag = 'smem constant byte address 0x4 - core index']
  #allocation1 [shape = 'u32[72,128]{1,0:T(1,128)}', space=vmem, size = 0x9000, scoped, tag = 'internal scratch']
  %s0 = inlined_call_operand.hbm [shape: f32[2,4,256], index: 0, kind: input, shape index: {}, may-alias: {0,5}]
  %s1 = inlined_call_operand.vmem [shape: f32[4,4], index: 1, kind: input, shape index: {}]
  %s2 = inlined_call_operand.vmem [shape: f32[4,1], index: 2, kind: input, shape index: {}]
  %s3 = inlined_call_operand.vmem [shape: f32[4,4], index: 3, kind: input, shape index: {}]
  %s4 = inlined_call_operand.vmem [shape: f32[4,1], index: 4, kind: input, shape index: {}]
  %s5 = inlined_call_operand.hbm [shape: f32[2,4,256], index: 5, kind: output, shape index: {}, may-alias: {0,5}]
  %s6 = sld [smem:[#allocation0]]
  $region57: #{tpu_custom_call.1} parent=0
    _
  %s8 = ssub.s32 1, %s6
  %s9 = scalar_select 0, %s8, %s6
  $region1: #{tpu_custom_call.1} parent=0
    #allocation2 [shape = 'u8[8192]{0}', space=vmem, size = 0x2000, scoped, tag = 'input window, operand 0']
    #allocation3 [shape = 's32[2]{0}', space=sflag, size = 0x8, scoped, tag = 'scoped memory for tpu_custom_call.1']
    #allocation4 [shape = 's32[2]{0}', space=sflag, size = 0x8, scoped, tag = 'scoped memory for tpu_custom_call.1']
    #allocation5 [shape = 'u8[8192]{0}', space=vmem, size = 0x2000, scoped, tag = 'output window, operand 0']
    %10 = vsyncpa [#allocation3], 0
    %s11 = scalar_lea.sflag [#allocation3], 1
    %12 = vsyncpa %s11, 0
    %13 = vsyncpa [#allocation4], 0
    %s14 = scalar_lea.sflag [#allocation4], 1
    %15 = vsyncpa %s14, 0
    loop: start=0, step=1, limit=4
    $region2: #{tpu_custom_call.1} parent=1 // loop_pre_header
      _
    $region3: #{tpu_custom_call.1} parent=1 // loop_header
      %s17 = sphi 0, %s21
      %p18 = scmp.ge.s32.totalorder %s17, 4
      %s24 = sphi 0, %s36
      %s25 = sphi 0, %s32
      %s26 = sphi 0, %s24
      %s27 = sphi 0, %s25
      %s28 = sphi 0, %s26
      %s29 = sphi 0, %s27
      %s41 = sphi 0, %s43
      %s44 = sphi 0, %s41
      %s45 = sphi 0, %s44
      %s61 = sphi 0, %s45
      %s65 = sphi 0, %s65
      %s67 = sphi 0, %s65
      %s68 = sphi 0, %s67
      %s82 = sphi 0, %s68
      %s86 = sphi 0, %s86
      %s88 = sphi 0, %s86
      %s89 = sphi 0, %s88
      %s103 = sphi 0, %s89
      %s107 = sphi 0, %s107
      %s109 = sphi 0, %s107
      %s110 = sphi 0, %s109
      %s124 = sphi 0, %s110
      %s128 = sphi 0, %s128
      %s130 = sphi 0, %s128
      %s131 = sphi 0, %s130
      %s145 = sphi 0, %s131
      %s153 = sphi 0, %s155
      %s156 = sphi 0, %s153
      %s157 = sphi 0, %s156
      %s173 = sphi 0, %s157
    $region4: #{tpu_custom_call.1} parent=1 // loop_header_branch
      %20 = sbr.rel (%p18) target = $region8
    $region5: #{tpu_custom_call.1} parent=1 // loop_body
      %s22 = ssub.s32 %s17, 1
      %s23 = ssub.s32 %s17, 2
      %s30 = sadd.s32 1, %s25
      %p31 = scmp.ge.s32.totalorder %s30, 1
      %s32 = scalar_select %p31, 0, %s30
      %s33 = sadd.s32 1, %s24
      %s34 = scalar_select %p31, %s33, %s24
      %p35 = scmp.ge.s32.totalorder %s34, 2
      %s36 = scalar_select %p35, 0, %s34
      %s37 = ssub.s32 %s24, %s36
      %s38 = ssub.s32 %s25, %s32
      %s39 = sor.u32 %s37, %s38
      %p40 = scmp.eq.s32.totalorder %s39, 0
      %s42 = sadd.s32 %s41, 1
      %s43 = scalar_select %p40, %s41, %s42
      %p46 = pneg %p40
      %p47 = scmp.eq.s32.totalorder %s17, 1
      %p48 = por %p46, %p47
      %p49 = scmp.ne.s32.totalorder %s41, %s44
      %p50 = scmp.eq.s32.totalorder %s17, 0
      %p51 = por %p49, %p50
      %p52 = scmp.ne.s32.totalorder %s41, %s44
      %p53 = scmp.eq.s32.totalorder %s22, 1
      %p54 = por %p52, %p53
      %p55 = scmp.ne.s32.totalorder %s44, %s45
      %p56 = scmp.eq.s32.totalorder %s22, 0
      %p57 = por %p55, %p56
      %p58 = scmp.ne.s32.totalorder %s44, %s45
      %p59 = scmp.eq.s32.totalorder %s23, 1
      %p60 = por %p58, %p59
      %p62 = scmp.ne.s32.totalorder %s45, %s61
      %p63 = scmp.eq.s32.totalorder %s23, 0
      %p64 = por %p62, %p63
      %s66 = sadd.s32 %s65, 1
      %p69 = scmp.eq.s32.totalorder %s17, 1
      %p70 = scmp.ne.s32.totalorder %s65, %s67
      %p71 = scmp.eq.s32.totalorder %s17, 0
      %p72 = por %p70, %p71
      %p73 = scmp.ne.s32.totalorder %s65, %s67
      %p74 = scmp.eq.s32.totalorder %s22, 1
      %p75 = por %p73, %p74
      %p76 = scmp.ne.s32.totalorder %s67, %s68
      %p77 = scmp.eq.s32.totalorder %s22, 0
      %p78 = por %p76, %p77
      %p79 = scmp.ne.s32.totalorder %s67, %s68
      %p80 = scmp.eq.s32.totalorder %s23, 1
      %p81 = por %p79, %p80
      %p83 = scmp.ne.s32.totalorder %s68, %s82
      %p84 = scmp.eq.s32.totalorder %s23, 0
      %p85 = por %p83, %p84
      %s87 = sadd.s32 %s86, 1
      %p90 = scmp.eq.s32.totalorder %s17, 1
      %p91 = scmp.ne.s32.totalorder %s86, %s88
      %p92 = scmp.eq.s32.totalorder %s17, 0
      %p93 = por %p91, %p92
      %p94 = scmp.ne.s32.totalorder %s86, %s88
      %p95 = scmp.eq.s32.totalorder %s22, 1
      %p96 = por %p94, %p95
      %p97 = scmp.ne.s32.totalorder %s88, %s89
      %p98 = scmp.eq.s32.totalorder %s22, 0
      %p99 = por %p97, %p98
      %p100 = scmp.ne.s32.totalorder %s88, %s89
      %p101 = scmp.eq.s32.totalorder %s23, 1
      %p102 = por %p100, %p101
      %p104 = scmp.ne.s32.totalorder %s89, %s103
      %p105 = scmp.eq.s32.totalorder %s23, 0
      %p106 = por %p104, %p105
      %s108 = sadd.s32 %s107, 1
      %p111 = scmp.eq.s32.totalorder %s17, 1
      %p112 = scmp.ne.s32.totalorder %s107, %s109
      %p113 = scmp.eq.s32.totalorder %s17, 0
      %p114 = por %p112, %p113
      %p115 = scmp.ne.s32.totalorder %s107, %s109
      %p116 = scmp.eq.s32.totalorder %s22, 1
      %p117 = por %p115, %p116
      %p118 = scmp.ne.s32.totalorder %s109, %s110
      %p119 = scmp.eq.s32.totalorder %s22, 0
      %p120 = por %p118, %p119
      %p121 = scmp.ne.s32.totalorder %s109, %s110
      %p122 = scmp.eq.s32.totalorder %s23, 1
      %p123 = por %p121, %p122
      %p125 = scmp.ne.s32.totalorder %s110, %s124
      %p126 = scmp.eq.s32.totalorder %s23, 0
      %p127 = por %p125, %p126
      %s129 = sadd.s32 %s128, 1
      %p132 = scmp.eq.s32.totalorder %s17, 1
      %p133 = scmp.ne.s32.totalorder %s128, %s130
      %p134 = scmp.eq.s32.totalorder %s17, 0
      %p135 = por %p133, %p134
      %p136 = scmp.ne.s32.totalorder %s128, %s130
      %p137 = scmp.eq.s32.totalorder %s22, 1
      %p138 = por %p136, %p137
      %p139 = scmp.ne.s32.totalorder %s130, %s131
      %p140 = scmp.eq.s32.totalorder %s22, 0
      %p141 = por %p139, %p140
      %p142 = scmp.ne.s32.totalorder %s130, %s131
      %p143 = scmp.eq.s32.totalorder %s23, 1
      %p144 = por %p142, %p143
      %p146 = scmp.ne.s32.totalorder %s131, %s145
      %p147 = scmp.eq.s32.totalorder %s23, 0
      %p148 = por %p146, %p147
      %s149 = ssub.s32 %s24, %s36
      %s150 = ssub.s32 %s25, %s32
      %s151 = sor.u32 %s149, %s150
      %p152 = scmp.eq.s32.totalorder %s151, 0
      %s154 = sadd.s32 %s153, 1
      %s155 = scalar_select %p152, %s153, %s154
      %p158 = pneg %p152
      %p159 = scmp.eq.s32.totalorder %s17, 1
      %p160 = por %p158, %p159
      %p161 = scmp.ne.s32.totalorder %s153, %s156
      %p162 = scmp.eq.s32.totalorder %s17, 0
      %p163 = por %p161, %p162
      %p164 = scmp.ne.s32.totalorder %s153, %s156
      %p165 = scmp.eq.s32.totalorder %s22, 1
      %p166 = por %p164, %p165
      %p167 = scmp.ne.s32.totalorder %s156, %s157
      %p168 = scmp.eq.s32.totalorder %s22, 0
      %p169 = por %p167, %p168
      %p170 = scmp.ne.s32.totalorder %s156, %s157
      %p171 = scmp.eq.s32.totalorder %s23, 1
      %p172 = por %p170, %p171
      %p174 = scmp.ne.s32.totalorder %s157, %s173
      %p175 = scmp.eq.s32.totalorder %s23, 0
      %p176 = por %p174, %p175
      %p177 = scmp.le.s32.totalorder 1, %s17
      %p178 = scmp.lt.s32.totalorder %s17, 3
      %p179 = pnand %p177, %p178
      %p180 = pneg %p179
      // Predicated region
      $region9: #{tpu_custom_call.1} parent=5 // pred_check
        _
      $region10: #{tpu_custom_call.1} parent=5 // pred_check_branch
        %182 = sbr.rel (%p179) target = $region12
      $region11: #{tpu_custom_call.1} parent=5 // pred_region
        %s183 = ssub.s32 %s17, 1
        // Predicated region
        $region13: #{tpu_custom_call.1} parent=11 // pred_check
          %p184 = pneg %p78
        $region14: #{tpu_custom_call.1} parent=11 // pred_check_branch
          %186 = sbr.rel (%p184) target = $region16
        $region15: #{tpu_custom_call.1} parent=11 // pred_region
          _
        $region16: #{tpu_custom_call.1} parent=11 // pred_fallthru
          _
        // Predicated region
        $region17: #{tpu_custom_call.1} parent=11 // pred_check
          %p187 = pneg %p99
        $region18: #{tpu_custom_call.1} parent=11 // pred_check_branch
          %189 = sbr.rel (%p187) target = $region20
        $region19: #{tpu_custom_call.1} parent=11 // pred_region
          _
        $region20: #{tpu_custom_call.1} parent=11 // pred_fallthru
          _
        // Predicated region
        $region21: #{tpu_custom_call.1} parent=11 // pred_check
          %p190 = pneg %p120
        $region22: #{tpu_custom_call.1} parent=11 // pred_check_branch
          %192 = sbr.rel (%p190) target = $region24
        $region23: #{tpu_custom_call.1} parent=11 // pred_region
          _
        $region24: #{tpu_custom_call.1} parent=11 // pred_fallthru
          _
        // Predicated region
        $region25: #{tpu_custom_call.1} parent=11 // pred_check
          %p193 = pneg %p141
        $region26: #{tpu_custom_call.1} parent=11 // pred_check_branch
          %195 = sbr.rel (%p193) target = $region28
        $region27: #{tpu_custom_call.1} parent=11 // pred_region
          _
        $region28: #{tpu_custom_call.1} parent=11 // pred_fallthru
          _
      $region12: #{tpu_custom_call.1} parent=5 // pred_fallthru
        _
      %p196 = scmp.lt.s32.totalorder %s17, 2
      // Predicated region
      $region29: #{tpu_custom_call.1} parent=5 // pred_check
        %p197 = pneg %p196
      $region30: #{tpu_custom_call.1} parent=5 // pred_check_branch
        %199 = sbr.rel (%p197) target = $region32
      $region31: #{tpu_custom_call.1} parent=5 // pred_region
        // Predicated region
        $region33: #{tpu_custom_call.1} parent=31 // pred_check
          %p200 = pneg %p51
        $region34: #{tpu_custom_call.1} parent=31 // pred_check_branch
          %202 = sbr.rel (%p200) target = $region36
        $region35: #{tpu_custom_call.1} parent=31 // pred_region
          %s203 = sand.u32 %s41, 1
          %s204 = scalar_lea.sflag [#allocation3], %s203
          %s205 = sand.u32 %s41, 1
          %s206 = smul.addr %s205, 8
          %s207 = scalar_lea.vmem [#allocation2], %s206
          %s208 = smul.u32 2, %s25
          %210 = vsyncadd %s204, 0
          %s211 = smul.addr %s24, 2
          %s212 = sadd.s32 %s208, %s211
          %s213 = smul.addr %s212, 4
          %s214 = scalar_lea.hbm %s0, %s213
          %s216 = sshll.u32 %s214, 4
          %s217 = int_to_ptr.hbm [resolvable:$true] %s216
          %s218 = sshll.u32 %s207, 4
          %s219 = int_to_ptr.vmem [resolvable:$true] %s218
          %221 = dma.hbm_to_vmem [thread:$0]  %s217, 128, %s219, %s204
        $region36: #{tpu_custom_call.1} parent=31 // pred_fallthru
          _
      $region32: #{tpu_custom_call.1} parent=5 // pred_fallthru
        _
      %p222 = scmp.le.s32.totalorder 1, %s17
      %p223 = scmp.lt.s32.totalorder %s17, 3
      %p224 = pnand %p222, %p223
      %p225 = pneg %p224
      // Predicated region
      $region37: #{tpu_custom_call.1} parent=5 // pred_check
        _
      $region38: #{tpu_custom_call.1} parent=5 // pred_check_branch
        %227 = sbr.rel (%p224) target = $region40
      $region39: #{tpu_custom_call.1} parent=5 // pred_region
        %s228 = ssub.s32 %s17, 1
        %s229 = sand.u32 %s44, 1
        %s230 = scalar_lea.sflag [#allocation3], %s229
        %s231 = sand.u32 %s44, 1
        %s232 = smul.addr %s231, 8
        %s233 = scalar_lea.vmem [#allocation2], %s232
        // Predicated region
        $region41: #{tpu_custom_call.1} parent=39 // pred_check
          %p234 = pneg %p57
        $region42: #{tpu_custom_call.1} parent=39 // pred_check_branch
          %236 = sbr.rel (%p234) target = $region44
        $region43: #{tpu_custom_call.1} parent=39 // pred_region
          %238 = dma.done %s230, 128
        $region44: #{tpu_custom_call.1} parent=39 // pred_fallthru
          _
        %s239 = sand.u32 %s44, 1
        %s240 = scalar_lea.sflag [#allocation3], %s239
        %s241 = sand.u32 %s44, 1
        %s242 = smul.addr %s241, 8
        %s243 = scalar_lea.vmem [#allocation2], %s242
        %p244 = pneg %p57
        %p245 = pneg %p54
        %p246 = pneg %p78
        %p247 = pneg %p75
        %p248 = pneg %p99
        %p249 = pneg %p96
        %p250 = pneg %p120
        %p251 = pneg %p117
        %p252 = pneg %p141
        %p253 = pneg %p138
        %p254 = pneg %p169
        %p255 = pneg %p166
        %s256 = sand.u32 %s156, 1
        %s257 = scalar_lea.sflag [#allocation4], %s256
        %s258 = sand.u32 %s156, 1
        %s259 = smul.addr %s258, 8
        %s260 = scalar_lea.vmem [#allocation5], %s259
        %s261 = smul.u32 2, %s27
        %s262 = smul.u32 2, %s27
        %v263 = vld [vmem:[%s233] sm:$0xff]
        %v264 = vmax.f32 %v263, 0.0
        %v265 = vld [vmem:[%s1] sm:$0xf]
        %v266 = vand.u32 2147483647, %v264
        %v267 = vld [vmem:[%s2] sm:$0xf]
        %269 = vset.pattern.permute.xlu0 0
        %270 = vperm.xlu0 %269, %v267
        %v271 = vpop.permute.xlu0 %270
        %274 = vst [vmem:[#allocation1] ss:$2 sm:$0xff] %v266
        %v275 = vld.sshfl [vmem:[#allocation1] sm:$0xff pattern:$0x75316420]
        %v276 = vld.sshfl [vmem:[#allocation1 + $0x8] sm:$0xff pattern:$0x75316420]
        %vm277 = vcmask 31744
        %v279 = vsel %vm277, %v265, 0
        %vm281 = vcmask 1043456
        %v282 = vsel %vm281, %v275, 0
        %v284 = vsel %vm281, %v276, 0
        %286 = vmatpush.msra.mxu0 0.0
        %287 = vmatpush.msra.mxu0 0.0
        %288 = vmatpush.msra.mxu0 0.0
        %289 = vmatpush.msra.mxu0 0.0
        %290 = vmatpush.msra.mxu0 0.0
        %291 = vmatpush.msra.mxu0 0.0
        %292 = vmatpush.msra.mxu0 0.0
        %293 = vmatpush.msra.mxu0 0.0
        %294 = vmatpush.msra.mxu0 0.0
        %295 = vmatpush.msra.mxu0 0.0
        %296 = vmatpush.msra.mxu0 0.0
        %297 = vmatpush.msra.mxu0 0.0
        %298 = vmatpush.msra.mxu0 0.0
        %299 = vmatpush.msra.mxu0 0.0
        %300 = vmatpush.msra.mxu0 0.0
        %301 = vmatpush.msra.mxu0 %v282
        %302 = vmatmul.f32.gmra.mxu0 %v279
        %v303 = vpop.f32.mrf.mxu0
        %v304 = vadd.f32 %v271, %v303
        %305 = vdwg.mxu0
        %306 = vmatpush.msra.mxu0 0.0
        %307 = vmatpush.msra.mxu0 0.0
        %308 = vmatpush.msra.mxu0 0.0
        %309 = vmatpush.msra.mxu0 0.0
        %310 = vmatpush.msra.mxu0 0.0
        %311 = vmatpush.msra.mxu0 0.0
        %312 = vmatpush.msra.mxu0 0.0
        %313 = vmatpush.msra.mxu0 0.0
        %314 = vmatpush.msra.mxu0 0.0
        %315 = vmatpush.msra.mxu0 0.0
        %316 = vmatpush.msra.mxu0 0.0
        %317 = vmatpush.msra.mxu0 0.0
        %318 = vmatpush.msra.mxu0 0.0
        %319 = vmatpush.msra.mxu0 0.0
        %320 = vmatpush.msra.mxu0 0.0
        %321 = vmatpush.msra.mxu0 %v284
        %322 = vmatmul.f32.gmra.mxu0 %v279
        %v323 = vpop.f32.mrf.mxu0
        %v324 = vadd.f32 %v271, %v323
        %325 = vdwg.mxu0
        %v326 = vrcp.pop %v304
        %v327 = vmul.f32 %v304, %v326
        %v328 = vsub.f32 1.0, %v327
        %v329 = vmul.f32 %v326, %v328
        %v330 = vadd.f32 %v326, %v329
        %vm331 = vweird.f32 %v304
        %vm332 = vweird.f32 %v326
        %vm333 = vmor %vm331, %vm332
        %v334 = vsel %vm333, %v326, %v330
        %v335 = vand.u32 2147483647, %v304
        %vm336 = vcmp.eq.f32.partialorder %v335, 8.507059e+37
        %v337 = vand.u32 %v304, 2147483648
        %v338 = vor.u32 1.1754944e-38, %v337
        %v339 = vsel %vm336, %v338, %v334
        %v340 = vrcp.pop %v324
        %v341 = vmul.f32 %v324, %v340
        %v342 = vsub.f32 1.0, %v341
        %v343 = vmul.f32 %v340, %v342
        %v344 = vadd.f32 %v340, %v343
        %vm345 = vweird.f32 %v324
        %vm346 = vweird.f32 %v340
        %vm347 = vmor %vm345, %vm346
        %v348 = vsel %vm347, %v340, %v344
        %v349 = vand.u32 2147483647, %v324
        %vm350 = vcmp.eq.f32.partialorder %v349, 8.507059e+37
        %v351 = vand.u32 %v324, 2147483648
        %v352 = vor.u32 1.1754944e-38, %v351
        %v353 = vsel %vm350, %v352, %v348
        %v356 = vrot.slane %v353, 4
        %v357 = vsel %vm281, %v339, %v356
        %v359 = vmul.f32 %v264, %v357
        %v360 = vld [vmem:[%s3] sm:$0xf]
        %v361 = vand.u32 2147483647, %v359
        %v362 = vld [vmem:[%s4] sm:$0xf]
        %364 = vset.pattern.permute.xlu0 0
        %365 = vperm.xlu0 %364, %v362
        %v366 = vpop.permute.xlu0 %365
        %369 = vst [vmem:[#allocation1] ss:$2 sm:$0xff] %v361
        %v370 = vld.sshfl [vmem:[#allocation1] sm:$0xff pattern:$0x75316420]
        %v371 = vld.sshfl [vmem:[#allocation1 + $0x8] sm:$0xff pattern:$0x75316420]
        %v373 = vsel %vm277, %v360, 0
        %v375 = vsel %vm281, %v370, 0
        %v377 = vsel %vm281, %v371, 0
        %379 = vmatpush.msra.mxu0 0.0
        %380 = vmatpush.msra.mxu0 0.0
        %381 = vmatpush.msra.mxu0 0.0
        %382 = vmatpush.msra.mxu0 0.0
        %383 = vmatpush.msra.mxu0 0.0
        %384 = vmatpush.msra.mxu0 0.0
        %385 = vmatpush.msra.mxu0 0.0
        %386 = vmatpush.msra.mxu0 0.0
        %387 = vmatpush.msra.mxu0 0.0
        %388 = vmatpush.msra.mxu0 0.0
        %389 = vmatpush.msra.mxu0 0.0
        %390 = vmatpush.msra.mxu0 0.0
        %391 = vmatpush.msra.mxu0 0.0
        %392 = vmatpush.msra.mxu0 0.0
        %393 = vmatpush.msra.mxu0 0.0
        %394 = vmatpush.msra.mxu0 %v375
        %395 = vmatmul.f32.gmra.mxu0 %v373
        %v396 = vpop.f32.mrf.mxu0
        %v397 = vadd.f32 %v366, %v396
        %398 = vdwg.mxu0
        %399 = vmatpush.msra.mxu0 0.0
        %400 = vmatpush.msra.mxu0 0.0
        %401 = vmatpush.msra.mxu0 0.0
        %402 = vmatpush.msra.mxu0 0.0
        %403 = vmatpush.msra.mxu0 0.0
        %404 = vmatpush.msra.mxu0 0.0
        %405 = vmatpush.msra.mxu0 0.0
        %406 = vmatpush.msra.mxu0 0.0
        %407 = vmatpush.msra.mxu0 0.0
        %408 = vmatpush.msra.mxu0 0.0
        %409 = vmatpush.msra.mxu0 0.0
        %410 = vmatpush.msra.mxu0 0.0
        %411 = vmatpush.msra.mxu0 0.0
        %412 = vmatpush.msra.mxu0 0.0
        %413 = vmatpush.msra.mxu0 0.0
        %414 = vmatpush.msra.mxu0 %v377
        %415 = vmatmul.f32.gmra.mxu0 %v373
        %v416 = vpop.f32.mrf.mxu0
        %v417 = vadd.f32 %v366, %v416
        %418 = vdwg.mxu0
        %v421 = vrot.slane %v417, 4
        %v422 = vsel %vm281, %v397, %v421
        %v424 = vmul.f32 %v359, %v422
        %425 = vst [vmem:[%s260] sm:$0xff] %v424
        %s426 = sand.u32 %s156, 1
        %s427 = scalar_lea.sflag [#allocation4], %s426
        %s428 = sand.u32 %s156, 1
        %s429 = smul.addr %s428, 8
        %s430 = scalar_lea.vmem [#allocation5], %s429
        // Predicated region
        $region45: #{tpu_custom_call.1} parent=39 // pred_check
          %p431 = pneg %p166
        $region46: #{tpu_custom_call.1} parent=39 // pred_check_branch
          %433 = sbr.rel (%p431) target = $region48
        $region47: #{tpu_custom_call.1} parent=39 // pred_region
          %s434 = smul.u32 2, %s27
          %436 = vsyncadd %s427, 0
          %s437 = smul.addr %s26, 2
          %s438 = sadd.s32 %s434, %s437
          %s439 = smul.addr %s438, 4
          %s440 = scalar_lea.hbm %s5, %s439
          %s442 = sshll.u32 %s430, 4
          %s443 = int_to_ptr.vmem [resolvable:$true] %s442
          %s444 = sshll.u32 %s440, 4
          %s445 = int_to_ptr.hbm [resolvable:$true] %s444
          %447 = dma.vmem_to_hbm [thread:$0]  %s443, 128, %s445, %s427
        $region48: #{tpu_custom_call.1} parent=39 // pred_fallthru
          _
      $region40: #{tpu_custom_call.1} parent=5 // pred_fallthru
        _
      %p448 = scmp.le.s32.totalorder 2, %s17
      // Predicated region
      $region49: #{tpu_custom_call.1} parent=5 // pred_check
        %p449 = pneg %p448
      $region50: #{tpu_custom_call.1} parent=5 // pred_check_branch
        %451 = sbr.rel (%p449) target = $region52
      $region51: #{tpu_custom_call.1} parent=5 // pred_region
        %s452 = ssub.s32 %s17, 2
        // Predicated region
        $region53: #{tpu_custom_call.1} parent=51 // pred_check
          %p453 = pneg %p172
        $region54: #{tpu_custom_call.1} parent=51 // pred_check_branch
          %455 = sbr.rel (%p453) target = $region56
        $region55: #{tpu_custom_call.1} parent=51 // pred_region
          %s456 = sand.u32 %s157, 1
          %s457 = scalar_lea.sflag [#allocation4], %s456
          %s458 = sand.u32 %s157, 1
          %s459 = smul.addr %s458, 8
          %s460 = scalar_lea.vmem [#allocation5], %s459
          %462 = dma.done %s457, 128
        $region56: #{tpu_custom_call.1} parent=51 // pred_fallthru
          _
      $region52: #{tpu_custom_call.1} parent=5 // pred_fallthru
        _
    $region6: #{tpu_custom_call.1} parent=1 // loop_footer
      %s21 = sadd.s32 1, %s17
    $region7: #{tpu_custom_call.1} parent=1 // loop_footer_branch
      %16 = sbr.rel target = $region3
    $region8: #{tpu_custom_call.1} parent=1 // loop_exit
      _
    %463 = vsyncpa [#allocation3], 1
    %s464 = scalar_lea.sflag [#allocation3], 1
    %465 = vsyncpa %s464, 1
    %466 = vsyncpa [#allocation4], 1
    %s467 = scalar_lea.sflag [#allocation4], 1
    %468 = vsyncpa %s467, 1

</llo_original>
